<compile_context>
chip_gen: v7x
topology: tpu7x:2x2x1
jax: 0.10.0
libtpu: 0.0.40
codegen_flags: <defaults>
</compile_context>

<pallas_src>
import functools

import jax
import jax.numpy as jnp
from jax.experimental import pallas as pl
from jax.experimental.pallas import tpu as pltpu


def _conv_im2col_kernel(x_ref, w_ref, bias_ref, conv_ref, stats_ref,
                        patches_ref, *, stride, kh, kw, th, ow, cin, cout_pad,
                        add_bias):
    """One (batch, row-block) tile of the convolution + BN partial sums.

    x_ref      : (Hp, Wp, Cin)          padded image (bf16); revisited across
                                        row blocks, so it is DMA'd once per n.
    w_ref      : (KH*KW*Cin, Cout_pad)  weight matrix (bf16), fetched once.
    bias_ref   : (1, Cout_pad)          conv bias (used only when add_bias).
    conv_ref   : (TH, OW, Cout_pad)     conv output tile (f32, lane dense).
    stats_ref  : (8, Cout_pad)          per-batch running [sum; sumsq; 0...],
                                        accumulated across the row-block axis.
    patches_ref: (TH*OW, KH*KW*Cin)     VMEM scratch holding the im2col tile.
    """
    r = pl.program_id(1)

    slab_h = (th - 1) * stride + kh
    row0 = pl.multiple_of(r * (th * stride), th * stride)
    # Input rows needed by this block of output rows (whole width, all Cin).
    x_slab = x_ref[pl.ds(row0, slab_h), :, :]              # (slab_h, Wp, Cin)

    # Assemble the im2col tile in VMEM scratch: column block (i*kw+j)*cin..+cin
    # holds tap (i, j).  Static column offsets -> plain vector stores.
    for i in range(kh):
        for j in range(kw):
            tap = jax.lax.slice(
                x_slab,
                (i, j, 0),
                (i + (th - 1) * stride + 1, j + (ow - 1) * stride + 1, cin),
                (stride, stride, 1))                       # (TH, OW, Cin)
            col0 = (i * kw + j) * cin
            patches_ref[:, col0:col0 + cin] = tap.reshape(th * ow, cin)

    # Single MXU dot: contraction over the whole kernel window (K = KH*KW*Cin).
    acc = jnp.dot(patches_ref[...], w_ref[...],
                  preferred_element_type=jnp.float32)      # (TH*OW, Cout_pad)

    if add_bias:
        acc = acc + bias_ref[...]                          # (1, Cout_pad) bcast

    conv_ref[...] = acc.reshape(th, ow, cout_pad)

    # BN partial sums (one pass computes both moments).
    @pl.when(r == 0)
    def _():
        stats_ref[...] = jnp.zeros(stats_ref.shape, stats_ref.dtype)

    s = jnp.sum(acc, axis=0, keepdims=True)                # (1, Cout_pad)
    ss = jnp.sum(acc * acc, axis=0, keepdims=True)         # (1, Cout_pad)
    upd = jnp.concatenate(
        [s, ss, jnp.zeros((6, cout_pad), jnp.float32)], axis=0)   # (8, Cout_pad)
    stats_ref[...] = stats_ref[...] + upd


def _bn_act_kernel(y_ref, scale_ref, shift_ref, o_ref, *, neg_slope):
    """Tiled finalize: y*scale + shift, then LeakyReLU(neg_slope)."""
    z = y_ref[...] * scale_ref[...] + shift_ref[...]       # (TH, OW, C) FMA
    o_ref[...] = jnp.where(z > 0, z, neg_slope * z)


def _largest_divisor_leq(n, cap):
    cap = max(1, min(n, cap))
    for t in range(cap, 0, -1):
        if n % t == 0:
            return t
    return 1


def cnn_block_forward(x_nchw, w_oihw, gamma, beta, bias, *, stride, padding,
                      use_batch_norm=True, eps=1e-5, neg_slope=0.1,
                      compute_dtype=jnp.bfloat16, row_tile=None,
                      vmem_limit_bytes=32 * 1024 * 1024):
    n, cin, h, w_in = x_nchw.shape
    cout, cin_w, kh, kw = w_oihw.shape
    assert cin == cin_w
    oh = (h + 2 * padding - kh) // stride + 1
    ow = (w_in + 2 * padding - kw) // stride + 1

    cout_pad = ((cout + 127) // 128) * 128                 # lane-dense output
    if row_tile is None:
        row_tile = max(1, 512 // max(ow, 1))               # ~512 matmul rows/tile
    th = _largest_divisor_leq(oh, row_tile)                # exact tiling of OH
    n_rb = oh // th
    kdim = kh * kw * cin
    hp, wp = h + 2 * padding, w_in + 2 * padding

    # ---- wrapper-side layout plumbing (bf16 pad, flattened HWIO weights) ----
    x_nhwc = jnp.transpose(x_nchw, (0, 2, 3, 1)).astype(compute_dtype)
    xp = jnp.pad(x_nhwc, ((0, 0), (padding, padding), (padding, padding), (0, 0)))

    w_mat = jnp.transpose(w_oihw, (2, 3, 1, 0)).reshape(kdim, cout)
    w_mat = jnp.pad(w_mat, ((0, 0), (0, cout_pad - cout))).astype(compute_dtype)

    gamma_p = jnp.pad(gamma.astype(jnp.float32), (0, cout_pad - cout))
    beta_p = jnp.pad(beta.astype(jnp.float32), (0, cout_pad - cout))
    bias_p = jnp.pad(bias.astype(jnp.float32),
                     (0, cout_pad - cout)).reshape(1, cout_pad)

    conv_kernel = functools.partial(
        _conv_im2col_kernel, stride=stride, kh=kh, kw=kw, th=th, ow=ow,
        cin=cin, cout_pad=cout_pad, add_bias=not use_batch_norm)

    # TODO(synk): for very large H*W the whole padded image no longer fits one
    # VMEM block; halo-tile the input with memory_space=pl.ANY + make_async_copy.
    conv_out, stats = pl.pallas_call(
        conv_kernel,
        grid_spec=pltpu.PrefetchScalarGridSpec(
            num_scalar_prefetch=0,
            grid=(n, n_rb),
            in_specs=[
                pl.BlockSpec((None, hp, wp, cin), lambda b, r: (b, 0, 0, 0)),
                pl.BlockSpec((kdim, cout_pad), lambda b, r: (0, 0)),
                pl.BlockSpec((1, cout_pad), lambda b, r: (0, 0)),
            ],
            out_specs=[
                pl.BlockSpec((None, th, ow, cout_pad), lambda b, r: (b, r, 0, 0)),
                pl.BlockSpec((None, 8, cout_pad), lambda b, r: (b, 0, 0)),
            ],
            scratch_shapes=[pltpu.VMEM((th * ow, kdim), compute_dtype)],
        ),
        out_shape=(
            jax.ShapeDtypeStruct((n, oh, ow, cout_pad), jnp.float32),
            jax.ShapeDtypeStruct((n, 8, cout_pad), jnp.float32),
        ),
        compiler_params=pltpu.CompilerParams(
            dimension_semantics=("parallel", "arbitrary"),
            vmem_limit_bytes=vmem_limit_bytes),
    )(xp, w_mat, bias_p)

    if not use_batch_norm:
        # PyTorch branch: conv (+bias), no BN, no activation.
        return jnp.transpose(conv_out[..., :cout], (0, 3, 1, 2))

    # ---- finalize BN stats (tiny per-channel vectors, pre-fused scale/shift) ----
    count = float(n * oh * ow)
    s_tot = jnp.sum(stats[:, 0, :], axis=0)
    ss_tot = jnp.sum(stats[:, 1, :], axis=0)
    mean = s_tot / count
    var = jnp.maximum(ss_tot / count - mean * mean, 0.0)   # biased var (train mode)
    scale = gamma_p * jax.lax.rsqrt(var + eps)
    shift = beta_p - mean * scale
    scale3 = scale.reshape(1, 1, cout_pad)
    shift3 = shift.reshape(1, 1, cout_pad)

    out_padded = pl.pallas_call(
        functools.partial(_bn_act_kernel, neg_slope=neg_slope),
        grid_spec=pltpu.PrefetchScalarGridSpec(
            num_scalar_prefetch=0,
            grid=(n, n_rb),
            in_specs=[
                pl.BlockSpec((None, th, ow, cout_pad), lambda b, r: (b, r, 0, 0)),
                pl.BlockSpec((1, 1, cout_pad), lambda b, r: (0, 0, 0)),
                pl.BlockSpec((1, 1, cout_pad), lambda b, r: (0, 0, 0)),
            ],
            out_specs=pl.BlockSpec((None, th, ow, cout_pad),
                                   lambda b, r: (b, r, 0, 0)),
        ),
        out_shape=jax.ShapeDtypeStruct((n, oh, ow, cout_pad), jnp.float32),
        compiler_params=pltpu.CompilerParams(
            dimension_semantics=("parallel", "parallel"),
            vmem_limit_bytes=vmem_limit_bytes),
    )(conv_out, scale3, shift3)

    return jnp.transpose(out_padded[..., :cout], (0, 3, 1, 2))  # back to NCHW


def _reference(x_nchw, w_oihw, gamma, beta, bias, *, stride, padding,
               use_bn=True, eps=1e-5, neg_slope=0.1,
               compute_dtype=jnp.bfloat16):
    """Pure-JAX reference at matching conv precision (bf16 MXU, f32 accum)."""
    y = jax.lax.conv_general_dilated(
        x_nchw.astype(compute_dtype), w_oihw.astype(compute_dtype),
        window_strides=(stride, stride),
        padding=[(padding, padding), (padding, padding)],
        dimension_numbers=("NCHW", "OIHW", "NCHW"),
        preferred_element_type=jnp.float32)
    if not use_bn:
        return y + bias.reshape(1, -1, 1, 1)
    mean = jnp.mean(y, axis=(0, 2, 3), keepdims=True)
    var = jnp.mean((y - mean) ** 2, axis=(0, 2, 3), keepdims=True)
    yn = (y - mean) * jax.lax.rsqrt(var + eps) * gamma.reshape(1, -1, 1, 1) \
         + beta.reshape(1, -1, 1, 1)
    return jnp.where(yn > 0, yn, neg_slope * yn)


if __name__ == "__main__":
    # CNNBlock(in_channels=4, out_channels=8, kernel_size=3, stride=1,
    #          padding=1, use_batch_norm=True) at small test shapes.
    N, CIN, H, W = 2, 4, 16, 16
    COUT, K, STRIDE, PAD = 8, 3, 1, 1

    key = jax.random.PRNGKey(0)
    kx, kw_ = jax.random.split(key)
    x = jax.random.normal(kx, (N, CIN, H, W), dtype=jnp.float32)
    w = jax.random.normal(kw_, (COUT, CIN, K, K), dtype=jnp.float32)
    w = w * (1.0 / jnp.sqrt(CIN * K * K))
    gamma = jnp.ones((COUT,), jnp.float32)    # BN weight default init
    beta = jnp.zeros((COUT,), jnp.float32)    # BN bias default init
    bias = jnp.zeros((COUT,), jnp.float32)    # unused (use_batch_norm=True)

    # row_tile=8 -> 2 row blocks per image: exercises the cross-tile BN
    # partial-sum accumulation even at this small spatial size.
    out = cnn_block_forward(x, w, gamma, beta, bias,
                            stride=STRIDE, padding=PAD,
                            use_batch_norm=True, row_tile=8)
    out = jax.block_until_ready(out)

    ref = _reference(x, w, gamma, beta, bias, stride=STRIDE, padding=PAD,
                     use_bn=True)
    assert out.shape == (N, COUT, H, W), out.shape
    max_err = float(jnp.max(jnp.abs(out - ref)))
    assert jnp.allclose(out, ref, atol=5e-3, rtol=5e-3), f"max abs err={max_err}"
    print("KERNEL_OK")
</pallas_src>

<mosaic_0001>
module attributes {stable_mosaic.version = 11 : i64} {
  func.func @_conv_im2col_kernel(%arg0: i32, %arg1: i32, %arg2: memref<1x18x18x4xbf16, #tpu.memory_space<vmem>>, %arg3: memref<36x128xbf16, #tpu.memory_space<vmem>>, %arg4: memref<1x128xf32, #tpu.memory_space<vmem>>, %arg5: memref<1x8x16x128xf32, #tpu.memory_space<vmem>>, %arg6: memref<1x8x128xf32, #tpu.memory_space<vmem>>, %arg7: memref<128x36xbf16, #tpu.memory_space<vmem>>) attributes {dimension_semantics = [#tpu.dimension_semantics<parallel>, #tpu.dimension_semantics<arbitrary>], iteration_bounds = array<i64: 2, 2>, scalar_prefetch = 0 : i64, scratch_operands = 1 : i64, tpu.core_type = #tpu.core_type<tc>, window_params = [{transform_indices = @transform_0, window_bounds = array<i64: 1, 18, 18, 4>}, {pipeline_mode = #tpu.pipeline_mode<synchronous>, transform_indices = @transform_1, window_bounds = array<i64: 36, 128>}, {pipeline_mode = #tpu.pipeline_mode<synchronous>, transform_indices = @transform_2, window_bounds = array<i64: 1, 128>}, {transform_indices = @transform_3, window_bounds = array<i64: 1, 8, 16, 128>}, {transform_indices = @transform_4, window_bounds = array<i64: 1, 8, 128>}]} {
    %c8_i32 = arith.constant 8 : i32
    %0 = arith.muli %arg1, %c8_i32 : i32
    %1 = tpu.assume_multiple %0, 8 : i32
    %c0 = arith.constant 0 : index
    %2 = arith.index_cast %1 : i32 to index
    %c0_0 = arith.constant 0 : index
    %c0_1 = arith.constant 0 : index
    %3 = vector.load %arg2[%c0, %2, %c0_0, %c0_1] : memref<1x18x18x4xbf16, #tpu.memory_space<vmem>>, vector<1x10x18x4xbf16>
    %4 = vector.shape_cast %3 : vector<1x10x18x4xbf16> to vector<10x18x4xbf16>
    %5 = vector.extract_strided_slice %4 {offsets = [0, 0, 0], sizes = [8, 16, 4], strides = [1, 1, 1]} : vector<10x18x4xbf16> to vector<8x16x4xbf16>
    %6 = vector.shape_cast %5 : vector<8x16x4xbf16> to vector<128x4xbf16>
    %c0_2 = arith.constant 0 : index
    %c0_3 = arith.constant 0 : index
    %7 = vector.load %arg7[%c0_2, %c0_3] : memref<128x36xbf16, #tpu.memory_space<vmem>>, vector<128x4xbf16>
    tpu.vector_store %arg7[%c0_2, %c0_3], %6 {strides = array<i32>} : memref<128x36xbf16, #tpu.memory_space<vmem>>, vector<128x4xbf16>,
    %8 = vector.extract_strided_slice %4 {offsets = [0, 1, 0], sizes = [8, 16, 4], strides = [1, 1, 1]} : vector<10x18x4xbf16> to vector<8x16x4xbf16>
    %9 = vector.shape_cast %8 : vector<8x16x4xbf16> to vector<128x4xbf16>
    %c0_4 = arith.constant 0 : index
    %c4 = arith.constant 4 : index
    %10 = vector.load %arg7[%c0_4, %c4] : memref<128x36xbf16, #tpu.memory_space<vmem>>, vector<128x4xbf16>
    tpu.vector_store %arg7[%c0_4, %c4], %9 {strides = array<i32>} : memref<128x36xbf16, #tpu.memory_space<vmem>>, vector<128x4xbf16>,
    %11 = vector.extract_strided_slice %4 {offsets = [0, 2, 0], sizes = [8, 16, 4], strides = [1, 1, 1]} : vector<10x18x4xbf16> to vector<8x16x4xbf16>
    %12 = vector.shape_cast %11 : vector<8x16x4xbf16> to vector<128x4xbf16>
    %c0_5 = arith.constant 0 : index
    %c8 = arith.constant 8 : index
    %13 = vector.load %arg7[%c0_5, %c8] : memref<128x36xbf16, #tpu.memory_space<vmem>>, vector<128x4xbf16>
    tpu.vector_store %arg7[%c0_5, %c8], %12 {strides = array<i32>} : memref<128x36xbf16, #tpu.memory_space<vmem>>, vector<128x4xbf16>,
    %14 = vector.extract_strided_slice %4 {offsets = [1, 0, 0], sizes = [8, 16, 4], strides = [1, 1, 1]} : vector<10x18x4xbf16> to vector<8x16x4xbf16>
    %15 = vector.shape_cast %14 : vector<8x16x4xbf16> to vector<128x4xbf16>
    %c0_6 = arith.constant 0 : index
    %c12 = arith.constant 12 : index
    %16 = vector.load %arg7[%c0_6, %c12] : memref<128x36xbf16, #tpu.memory_space<vmem>>, vector<128x4xbf16>
    tpu.vector_store %arg7[%c0_6, %c12], %15 {strides = array<i32>} : memref<128x36xbf16, #tpu.memory_space<vmem>>, vector<128x4xbf16>,
    %17 = vector.extract_strided_slice %4 {offsets = [1, 1, 0], sizes = [8, 16, 4], strides = [1, 1, 1]} : vector<10x18x4xbf16> to vector<8x16x4xbf16>
    %18 = vector.shape_cast %17 : vector<8x16x4xbf16> to vector<128x4xbf16>
    %c0_7 = arith.constant 0 : index
    %c16 = arith.constant 16 : index
    %19 = vector.load %arg7[%c0_7, %c16] : memref<128x36xbf16, #tpu.memory_space<vmem>>, vector<128x4xbf16>
    tpu.vector_store %arg7[%c0_7, %c16], %18 {strides = array<i32>} : memref<128x36xbf16, #tpu.memory_space<vmem>>, vector<128x4xbf16>,
    %20 = vector.extract_strided_slice %4 {offsets = [1, 2, 0], sizes = [8, 16, 4], strides = [1, 1, 1]} : vector<10x18x4xbf16> to vector<8x16x4xbf16>
    %21 = vector.shape_cast %20 : vector<8x16x4xbf16> to vector<128x4xbf16>
    %c0_8 = arith.constant 0 : index
    %c20 = arith.constant 20 : index
    %22 = vector.load %arg7[%c0_8, %c20] : memref<128x36xbf16, #tpu.memory_space<vmem>>, vector<128x4xbf16>
    tpu.vector_store %arg7[%c0_8, %c20], %21 {strides = array<i32>} : memref<128x36xbf16, #tpu.memory_space<vmem>>, vector<128x4xbf16>,
    %23 = vector.extract_strided_slice %4 {offsets = [2, 0, 0], sizes = [8, 16, 4], strides = [1, 1, 1]} : vector<10x18x4xbf16> to vector<8x16x4xbf16>
    %24 = vector.shape_cast %23 : vector<8x16x4xbf16> to vector<128x4xbf16>
    %c0_9 = arith.constant 0 : index
    %c24 = arith.constant 24 : index
    %25 = vector.load %arg7[%c0_9, %c24] : memref<128x36xbf16, #tpu.memory_space<vmem>>, vector<128x4xbf16>
    tpu.vector_store %arg7[%c0_9, %c24], %24 {strides = array<i32>} : memref<128x36xbf16, #tpu.memory_space<vmem>>, vector<128x4xbf16>,
    %26 = vector.extract_strided_slice %4 {offsets = [2, 1, 0], sizes = [8, 16, 4], strides = [1, 1, 1]} : vector<10x18x4xbf16> to vector<8x16x4xbf16>
    %27 = vector.shape_cast %26 : vector<8x16x4xbf16> to vector<128x4xbf16>
    %c0_10 = arith.constant 0 : index
    %c28 = arith.constant 28 : index
    %28 = vector.load %arg7[%c0_10, %c28] : memref<128x36xbf16, #tpu.memory_space<vmem>>, vector<128x4xbf16>
    tpu.vector_store %arg7[%c0_10, %c28], %27 {strides = array<i32>} : memref<128x36xbf16, #tpu.memory_space<vmem>>, vector<128x4xbf16>,
    %29 = vector.extract_strided_slice %4 {offsets = [2, 2, 0], sizes = [8, 16, 4], strides = [1, 1, 1]} : vector<10x18x4xbf16> to vector<8x16x4xbf16>
    %30 = vector.shape_cast %29 : vector<8x16x4xbf16> to vector<128x4xbf16>
    %c0_11 = arith.constant 0 : index
    %c32 = arith.constant 32 : index
    %31 = vector.load %arg7[%c0_11, %c32] : memref<128x36xbf16, #tpu.memory_space<vmem>>, vector<128x4xbf16>
    tpu.vector_store %arg7[%c0_11, %c32], %30 {strides = array<i32>} : memref<128x36xbf16, #tpu.memory_space<vmem>>, vector<128x4xbf16>,
    %c0_12 = arith.constant 0 : index
    %c0_13 = arith.constant 0 : index
    %32 = vector.load %arg7[%c0_12, %c0_13] : memref<128x36xbf16, #tpu.memory_space<vmem>>, vector<128x36xbf16>
    %c0_14 = arith.constant 0 : index
    %c0_15 = arith.constant 0 : index
    %33 = vector.load %arg3[%c0_14, %c0_15] : memref<36x128xbf16, #tpu.memory_space<vmem>>, vector<36x128xbf16>
    %cst = arith.constant dense<0.000000e+00> : vector<128x128xf32>
    %34 = tpu.matmul %32, %33, %cst {dimension_numbers = #tpu.dot_dimension_numbers<[1], [0], [0], [1], [0, 0, 1, 1], [], []>} : vector<128x36xbf16>, vector<36x128xbf16>, vector<128x128xf32> -> vector<128x128xf32>
    %35 = vector.shape_cast %34 : vector<128x128xf32> to vector<8x16x128xf32>
    %c0_16 = arith.constant 0 : index
    %c0_17 = arith.constant 0 : index
    %c0_18 = arith.constant 0 : index
    %c0_19 = arith.constant 0 : index
    %36 = vector.load %arg5[%c0_16, %c0_17, %c0_18, %c0_19] : memref<1x8x16x128xf32, #tpu.memory_space<vmem>>, vector<1x8x16x128xf32>
    %37 = vector.shape_cast %36 : vector<1x8x16x128xf32> to vector<8x16x128xf32>
    %38 = vector.shape_cast %35 : vector<8x16x128xf32> to vector<1x8x16x128xf32>
    tpu.vector_store %arg5[%c0_16, %c0_17, %c0_18, %c0_19], %38 {strides = array<i32>} : memref<1x8x16x128xf32, #tpu.memory_space<vmem>>, vector<1x8x16x128xf32>,
    %c0_i32 = arith.constant 0 : i32
    %39 = arith.cmpi eq, %arg1, %c0_i32 : i32
    %40 = arith.extui %39 : i1 to i32
    %c0_i32_20 = arith.constant 0 : i32
    %41 = arith.cmpi ne, %40, %c0_i32_20 : i32
    scf.if %41 {
      %cst_30 = arith.constant 0.000000e+00 : f32
      %55 = vector.broadcast %cst_30 : f32 to vector<8x128xf32>
      %c0_31 = arith.constant 0 : index
      %c0_32 = arith.constant 0 : index
      %c0_33 = arith.constant 0 : index
      %56 = vector.load %arg6[%c0_31, %c0_32, %c0_33] : memref<1x8x128xf32, #tpu.memory_space<vmem>>, vector<1x8x128xf32>
      %57 = vector.shape_cast %56 : vector<1x8x128xf32> to vector<8x128xf32>
      %58 = vector.shape_cast %55 : vector<8x128xf32> to vector<1x8x128xf32>
      tpu.vector_store %arg6[%c0_31, %c0_32, %c0_33], %58 {strides = array<i32>} : memref<1x8x128xf32, #tpu.memory_space<vmem>>, vector<1x8x128xf32>,
    } else {
    }
    %cst_21 = arith.constant dense<0.000000e+00> : vector<128xf32>
    %42 = vector.multi_reduction <add>, %34, %cst_21 [0] : vector<128x128xf32> to vector<128xf32>
    %43 = vector.shape_cast %42 : vector<128xf32> to vector<1x128xf32>
    %44 = arith.mulf %34, %34 : vector<128x128xf32>
    %cst_22 = arith.constant dense<0.000000e+00> : vector<128xf32>
    %45 = vector.multi_reduction <add>, %44, %cst_22 [0] : vector<128x128xf32> to vector<128xf32>
    %46 = vector.shape_cast %45 : vector<128xf32> to vector<1x128xf32>
    %cst_23 = arith.constant 0.000000e+00 : f32
    %47 = vector.broadcast %cst_23 : f32 to vector<6x128xf32>
    %48 = tpu.concatenate %43, %46, %47 in 0 : vector<1x128xf32>, vector<1x128xf32>, vector<6x128xf32> -> vector<8x128xf32>
    %c0_24 = arith.constant 0 : index
    %c0_25 = arith.constant 0 : index
    %c0_26 = arith.constant 0 : index
    %49 = vector.load %arg6[%c0_24, %c0_25, %c0_26] : memref<1x8x128xf32, #tpu.memory_space<vmem>>, vector<1x8x128xf32>
    %50 = vector.shape_cast %49 : vector<1x8x128xf32> to vector<8x128xf32>
    %51 = arith.addf %50, %48 : vector<8x128xf32>
    %c0_27 = arith.constant 0 : index
    %c0_28 = arith.constant 0 : index
    %c0_29 = arith.constant 0 : index
    %52 = vector.load %arg6[%c0_27, %c0_28, %c0_29] : memref<1x8x128xf32, #tpu.memory_space<vmem>>, vector<1x8x128xf32>
    %53 = vector.shape_cast %52 : vector<1x8x128xf32> to vector<8x128xf32>
    %54 = vector.shape_cast %51 : vector<8x128xf32> to vector<1x8x128xf32>
    tpu.vector_store %arg6[%c0_27, %c0_28, %c0_29], %54 {strides = array<i32>} : memref<1x8x128xf32, #tpu.memory_space<vmem>>, vector<1x8x128xf32>,
    return
  }
  func.func @transform_0(%arg0: i32, %arg1: i32) -> (i32, i32, i32, i32) {
    %c0_i32 = arith.constant 0 : i32
    %c0_i32_0 = arith.constant 0 : i32
    %c0_i32_1 = arith.constant 0 : i32
    %c0_i32_2 = arith.constant 0 : i32
    return %arg0, %c0_i32, %c0_i32_0, %c0_i32_1 : i32, i32, i32, i32
  }
  func.func @transform_1(%arg0: i32, %arg1: i32) -> (i32, i32) {
    %c0_i32 = arith.constant 0 : i32
    %c0_i32_0 = arith.constant 0 : i32
    %c0_i32_1 = arith.constant 0 : i32
    return %c0_i32, %c0_i32_0 : i32, i32
  }
  func.func @transform_2(%arg0: i32, %arg1: i32) -> (i32, i32) {
    %c0_i32 = arith.constant 0 : i32
    %c0_i32_0 = arith.constant 0 : i32
    %c0_i32_1 = arith.constant 0 : i32
    return %c0_i32, %c0_i32_0 : i32, i32
  }
  func.func @transform_3(%arg0: i32, %arg1: i32) -> (i32, i32, i32, i32) {
    %c0_i32 = arith.constant 0 : i32
    %c0_i32_0 = arith.constant 0 : i32
    %c0_i32_1 = arith.constant 0 : i32
    return %arg0, %arg1, %c0_i32, %c0_i32_0 : i32, i32, i32, i32
  }
  func.func @transform_4(%arg0: i32, %arg1: i32) -> (i32, i32, i32) {
    %c0_i32 = arith.constant 0 : i32
    %c0_i32_0 = arith.constant 0 : i32
    %c0_i32_1 = arith.constant 0 : i32
    return %arg0, %c0_i32, %c0_i32_0 : i32, i32, i32
  }
}

</mosaic_0001>

<llo_original>
// kernel: tpu_custom_call.1
$region0: #{tpu_custom_call.1}
  #allocation0 [shape = 'u32[]', space=smem, size = 0x4, offset = 0x4, fixed_abs, tag = 'smem constant byte address 0x4 - core index']
  #allocation1 [shape = 'u32[144,128]{1,0:T(1,128)}', space=vmem, size = 0x12000, scoped, tag = 'internal scratch']
  #allocation2 [shape = 'bf16[128,36]{1,0:T(16,128)(2,1)}', space=vmem, size = 0x8000, scoped, tag = 'scratch operand']
  %s0 = inlined_call_operand.vmem [shape: bf16[2,18,18,4], index: 0, kind: input, shape index: {}]
  %s1 = inlined_call_operand.vmem [shape: bf16[36,128], index: 1, kind: input, shape index: {}]
  %s2 = inlined_call_operand.vmem [shape: f32[1,128], index: 2, kind: input, shape index: {}]
  %s3 = inlined_call_operand.hbm [shape: f32[2,16,16,128], index: 3, kind: output, shape index: {0}]
  %s4 = inlined_call_operand.hbm [shape: f32[2,8,128], index: 4, kind: output, shape index: {1}]
  %5 = xla_tuple %s3, %s4
  %s6 = sld [smem:[#allocation0]]
  $region57: #{tpu_custom_call.1} parent=0
    _
  %s8 = ssub.s32 1, %s6
  %s9 = scalar_select 0, %s8, %s6
  $region1: #{tpu_custom_call.1} parent=0
    #allocation3 [shape = 'u8[131072]{0}', space=vmem, size = 0x20000, scoped, tag = 'output window, operand 0']
    #allocation4 [shape = 's32[2]{0}', space=sflag, size = 0x8, scoped, tag = 'scoped memory for tpu_custom_call.1']
    #allocation5 [shape = 'u8[8192]{0}', space=vmem, size = 0x2000, scoped, tag = 'output window, operand 1']
    #allocation6 [shape = 's32[2]{0}', space=sflag, size = 0x8, scoped, tag = 'scoped memory for tpu_custom_call.1']
    %10 = vsyncpa [#allocation4], 0
    %s11 = scalar_lea.sflag [#allocation4], 1
    %12 = vsyncpa %s11, 0
    %13 = vsyncpa [#allocation6], 0
    %s14 = scalar_lea.sflag [#allocation6], 1
    %15 = vsyncpa %s14, 0
    loop: start=0, step=1, limit=6
    $region2: #{tpu_custom_call.1} parent=1 // loop_pre_header
      _
    $region3: #{tpu_custom_call.1} parent=1 // loop_header
      %s17 = sphi 0, %s21
      %p18 = scmp.ge.s32.totalorder %s17, 6
      %s24 = sphi 0, %s36
      %s25 = sphi 0, %s32
      %s26 = sphi 0, %s24
      %s27 = sphi 0, %s25
      %s28 = sphi 0, %s26
      %s29 = sphi 0, %s27
      %s39 = sphi 0, %s41
      %s42 = sphi 0, %s39
      %s43 = sphi 0, %s42
      %s59 = sphi 0, %s43
      %s63 = sphi 0, %s63
      %s65 = sphi 0, %s63
      %s66 = sphi 0, %s65
      %s80 = sphi 0, %s66
      %s84 = sphi 0, %s84
      %s86 = sphi 0, %s84
      %s87 = sphi 0, %s86
      %s101 = sphi 0, %s87
      %s109 = sphi 0, %s111
      %s112 = sphi 0, %s109
      %s113 = sphi 0, %s112
      %s129 = sphi 0, %s113
      %s135 = sphi 0, %s137
      %s138 = sphi 0, %s135
      %s139 = sphi 0, %s138
      %s155 = sphi 0, %s139
    $region4: #{tpu_custom_call.1} parent=1 // loop_header_branch
      %20 = sbr.rel (%p18) target = $region8
    $region5: #{tpu_custom_call.1} parent=1 // loop_body
      %s22 = ssub.s32 %s17, 1
      %s23 = ssub.s32 %s17, 2
      %s30 = sadd.s32 1, %s25
      %p31 = scmp.ge.s32.totalorder %s30, 2
      %s32 = scalar_select %p31, 0, %s30
      %s33 = sadd.s32 1, %s24
      %s34 = scalar_select %p31, %s33, %s24
      %p35 = scmp.ge.s32.totalorder %s34, 2
      %s36 = scalar_select %p35, 0, %s34
      %s37 = ssub.s32 %s24, %s36
      %p38 = scmp.eq.s32.totalorder %s37, 0
      %s40 = sadd.s32 %s39, 1
      %s41 = scalar_select %p38, %s39, %s40
      %p44 = pneg %p38
      %p45 = scmp.eq.s32.totalorder %s17, 3
      %p46 = por %p44, %p45
      %p47 = scmp.ne.s32.totalorder %s39, %s42
      %p48 = scmp.eq.s32.totalorder %s17, 0
      %p49 = por %p47, %p48
      %p50 = scmp.ne.s32.totalorder %s39, %s42
      %p51 = scmp.eq.s32.totalorder %s22, 3
      %p52 = por %p50, %p51
      %p53 = scmp.ne.s32.totalorder %s42, %s43
      %p54 = scmp.eq.s32.totalorder %s22, 0
      %p55 = por %p53, %p54
      %p56 = scmp.ne.s32.totalorder %s42, %s43
      %p57 = scmp.eq.s32.totalorder %s23, 3
      %p58 = por %p56, %p57
      %p60 = scmp.ne.s32.totalorder %s43, %s59
      %p61 = scmp.eq.s32.totalorder %s23, 0
      %p62 = por %p60, %p61
      %s64 = sadd.s32 %s63, 1
      %p67 = scmp.eq.s32.totalorder %s17, 3
      %p68 = scmp.ne.s32.totalorder %s63, %s65
      %p69 = scmp.eq.s32.totalorder %s17, 0
      %p70 = por %p68, %p69
      %p71 = scmp.ne.s32.totalorder %s63, %s65
      %p72 = scmp.eq.s32.totalorder %s22, 3
      %p73 = por %p71, %p72
      %p74 = scmp.ne.s32.totalorder %s65, %s66
      %p75 = scmp.eq.s32.totalorder %s22, 0
      %p76 = por %p74, %p75
      %p77 = scmp.ne.s32.totalorder %s65, %s66
      %p78 = scmp.eq.s32.totalorder %s23, 3
      %p79 = por %p77, %p78
      %p81 = scmp.ne.s32.totalorder %s66, %s80
      %p82 = scmp.eq.s32.totalorder %s23, 0
      %p83 = por %p81, %p82
      %s85 = sadd.s32 %s84, 1
      %p88 = scmp.eq.s32.totalorder %s17, 3
      %p89 = scmp.ne.s32.totalorder %s84, %s86
      %p90 = scmp.eq.s32.totalorder %s17, 0
      %p91 = por %p89, %p90
      %p92 = scmp.ne.s32.totalorder %s84, %s86
      %p93 = scmp.eq.s32.totalorder %s22, 3
      %p94 = por %p92, %p93
      %p95 = scmp.ne.s32.totalorder %s86, %s87
      %p96 = scmp.eq.s32.totalorder %s22, 0
      %p97 = por %p95, %p96
      %p98 = scmp.ne.s32.totalorder %s86, %s87
      %p99 = scmp.eq.s32.totalorder %s23, 3
      %p100 = por %p98, %p99
      %p102 = scmp.ne.s32.totalorder %s87, %s101
      %p103 = scmp.eq.s32.totalorder %s23, 0
      %p104 = por %p102, %p103
      %s105 = ssub.s32 %s24, %s36
      %s106 = ssub.s32 %s25, %s32
      %s107 = sor.u32 %s105, %s106
      %p108 = scmp.eq.s32.totalorder %s107, 0
      %s110 = sadd.s32 %s109, 1
      %s111 = scalar_select %p108, %s109, %s110
      %p114 = pneg %p108
      %p115 = scmp.eq.s32.totalorder %s17, 3
      %p116 = por %p114, %p115
      %p117 = scmp.ne.s32.totalorder %s109, %s112
      %p118 = scmp.eq.s32.totalorder %s17, 0
      %p119 = por %p117, %p118
      %p120 = scmp.ne.s32.totalorder %s109, %s112
      %p121 = scmp.eq.s32.totalorder %s22, 3
      %p122 = por %p120, %p121
      %p123 = scmp.ne.s32.totalorder %s112, %s113
      %p124 = scmp.eq.s32.totalorder %s22, 0
      %p125 = por %p123, %p124
      %p126 = scmp.ne.s32.totalorder %s112, %s113
      %p127 = scmp.eq.s32.totalorder %s23, 3
      %p128 = por %p126, %p127
      %p130 = scmp.ne.s32.totalorder %s113, %s129
      %p131 = scmp.eq.s32.totalorder %s23, 0
      %p132 = por %p130, %p131
      %s133 = ssub.s32 %s24, %s36
      %p134 = scmp.eq.s32.totalorder %s133, 0
      %s136 = sadd.s32 %s135, 1
      %s137 = scalar_select %p134, %s135, %s136
      %p140 = pneg %p134
      %p141 = scmp.eq.s32.totalorder %s17, 3
      %p142 = por %p140, %p141
      %p143 = scmp.ne.s32.totalorder %s135, %s138
      %p144 = scmp.eq.s32.totalorder %s17, 0
      %p145 = por %p143, %p144
      %p146 = scmp.ne.s32.totalorder %s135, %s138
      %p147 = scmp.eq.s32.totalorder %s22, 3
      %p148 = por %p146, %p147
      %p149 = scmp.ne.s32.totalorder %s138, %s139
      %p150 = scmp.eq.s32.totalorder %s22, 0
      %p151 = por %p149, %p150
      %p152 = scmp.ne.s32.totalorder %s138, %s139
      %p153 = scmp.eq.s32.totalorder %s23, 3
      %p154 = por %p152, %p153
      %p156 = scmp.ne.s32.totalorder %s139, %s155
      %p157 = scmp.eq.s32.totalorder %s23, 0
      %p158 = por %p156, %p157
      %p159 = scmp.le.s32.totalorder 1, %s17
      %p160 = scmp.lt.s32.totalorder %s17, 5
      %p161 = pnand %p159, %p160
      %p162 = pneg %p161
      // Predicated region
      $region9: #{tpu_custom_call.1} parent=5 // pred_check
        _
      $region10: #{tpu_custom_call.1} parent=5 // pred_check_branch
        %164 = sbr.rel (%p161) target = $region12
      $region11: #{tpu_custom_call.1} parent=5 // pred_region
        %s165 = ssub.s32 %s17, 1
        // Predicated region
        $region13: #{tpu_custom_call.1} parent=11 // pred_check
          %p166 = pneg %p76
        $region14: #{tpu_custom_call.1} parent=11 // pred_check_branch
          %168 = sbr.rel (%p166) target = $region16
        $region15: #{tpu_custom_call.1} parent=11 // pred_region
          _
        $region16: #{tpu_custom_call.1} parent=11 // pred_fallthru
          _
        // Predicated region
        $region17: #{tpu_custom_call.1} parent=11 // pred_check
          %p169 = pneg %p97
        $region18: #{tpu_custom_call.1} parent=11 // pred_check_branch
          %171 = sbr.rel (%p169) target = $region20
        $region19: #{tpu_custom_call.1} parent=11 // pred_region
          _
        $region20: #{tpu_custom_call.1} parent=11 // pred_fallthru
          _
      $region12: #{tpu_custom_call.1} parent=5 // pred_fallthru
        _
      %p172 = scmp.lt.s32.totalorder %s17, 4
      // Predicated region
      $region21: #{tpu_custom_call.1} parent=5 // pred_check
        %p173 = pneg %p172
      $region22: #{tpu_custom_call.1} parent=5 // pred_check_branch
        %175 = sbr.rel (%p173) target = $region24
      $region23: #{tpu_custom_call.1} parent=5 // pred_region
        // Predicated region
        $region25: #{tpu_custom_call.1} parent=23 // pred_check
          %p176 = pneg %p49
        $region26: #{tpu_custom_call.1} parent=23 // pred_check_branch
          %178 = sbr.rel (%p176) target = $region28
        $region27: #{tpu_custom_call.1} parent=23 // pred_region
          %p179 = scmp.lt.s32.totalorder %s24, 1
          %s180 = scalar_select %p179, %s24, 1
          %s181 = smul.addr %s180, 54
          %s182 = smul.addr %s181, 4
          %s183 = scalar_lea.vmem %s0, %s182
        $region28: #{tpu_custom_call.1} parent=23 // pred_fallthru
          _
      $region24: #{tpu_custom_call.1} parent=5 // pred_fallthru
        _
      %p184 = scmp.le.s32.totalorder 1, %s17
      %p185 = scmp.lt.s32.totalorder %s17, 5
      %p186 = pnand %p184, %p185
      %p187 = pneg %p186
      // Predicated region
      $region29: #{tpu_custom_call.1} parent=5 // pred_check
        _
      $region30: #{tpu_custom_call.1} parent=5 // pred_check_branch
        %189 = sbr.rel (%p186) target = $region32
      $region31: #{tpu_custom_call.1} parent=5 // pred_region
        %s190 = ssub.s32 %s17, 1
        %p191 = scmp.lt.s32.totalorder %s26, 1
        %s192 = scalar_select %p191, %s26, 1
        %s193 = smul.addr %s192, 54
        %s194 = smul.addr %s193, 4
        %s195 = scalar_lea.vmem %s0, %s194
        %p196 = pneg %p55
        %p197 = pneg %p52
        %p198 = pneg %p76
        %p199 = pneg %p73
        %p200 = pneg %p97
        %p201 = pneg %p94
        %p202 = pneg %p125
        %p203 = pneg %p122
        %s204 = sand.u32 %s112, 1
        %s205 = scalar_lea.sflag [#allocation4], %s204
        %s206 = sand.u32 %s112, 1
        %s207 = smul.addr %s206, 128
        %s208 = scalar_lea.vmem [#allocation3], %s207
        %p209 = pneg %p151
        %p210 = pneg %p148
        %s211 = sand.u32 %s138, 1
        %s212 = scalar_lea.sflag [#allocation6], %s211
        %s213 = sand.u32 %s138, 1
        %s214 = smul.addr %s213, 8
        %s215 = scalar_lea.vmem [#allocation5], %s214
        %p216 = scmp.lt.s32.totalorder %s26, 1
        %s217 = scalar_select %p216, %s26, 1
        %s218 = smul.addr %s217, 54
        %s219 = smul.addr %s218, 4
        %s220 = scalar_lea.vmem %s0, %s219
        %s221 = smul.u32 8, %s27
        %s223 = smul.u32 %s27, 8
        %s224 = smul.u32 %s223, 3
        %s225 = smul.addr %s224, 4
        %s226 = scalar_lea.vmem %s220, %s225
        %v227 = vld [vmem:[%s226] sm:$0xf]
        %v228 = vld [vmem:[%s226 + $0x4] sm:$0xf]
        %v229 = vld [vmem:[%s226 + $0x8] sm:$0x1]
        %v230 = vld [vmem:[%s226 + $0xc] sm:$0xf]
        %v231 = vld [vmem:[%s226 + $0x10] sm:$0xf]
        %v232 = vld [vmem:[%s226 + $0x14] sm:$0x1]
        %v233 = vld [vmem:[%s226 + $0x18] sm:$0xf]
        %v234 = vld [vmem:[%s226 + $0x1c] sm:$0xf]
        %v235 = vld [vmem:[%s226 + $0x20] sm:$0x1]
        %v236 = vld [vmem:[%s226 + $0x24] sm:$0xf]
        %v237 = vld [vmem:[%s226 + $0x28] sm:$0xf]
        %v238 = vld [vmem:[%s226 + $0x2c] sm:$0x1]
        %v239 = vld [vmem:[%s226 + $0x30] sm:$0xf]
        %v240 = vld [vmem:[%s226 + $0x34] sm:$0xf]
        %v241 = vld [vmem:[%s226 + $0x38] sm:$0x1]
        %v242 = vld [vmem:[%s226 + $0x3c] sm:$0xf]
        %v243 = vld [vmem:[%s226 + $0x40] sm:$0xf]
        %v244 = vld [vmem:[%s226 + $0x44] sm:$0x1]
        %v245 = vld [vmem:[%s226 + $0x48] sm:$0xf]
        %v246 = vld [vmem:[%s226 + $0x4c] sm:$0xf]
        %v247 = vld [vmem:[%s226 + $0x50] sm:$0x1]
        %v248 = vld [vmem:[%s226 + $0x54] sm:$0xf]
        %v249 = vld [vmem:[%s226 + $0x58] sm:$0xf]
        %v250 = vld [vmem:[%s226 + $0x5c] sm:$0x1]
        %v251 = vld [vmem:[%s226 + $0x60] sm:$0xf]
        %v252 = vld [vmem:[%s226 + $0x64] sm:$0xf]
        %v253 = vld [vmem:[%s226 + $0x68] sm:$0x1]
        %v254 = vld [vmem:[%s226 + $0x6c] sm:$0xf]
        %v255 = vld [vmem:[%s226 + $0x70] sm:$0xf]
        %v256 = vld [vmem:[%s226 + $0x74] sm:$0x1]
        %v273 = vunpack.c.l.b16 %v227
        %v274 = vunpack.c.l.b16 %v228
        %v275 = vunpack.c.l.b16 %v230
        %v276 = vunpack.c.l.b16 %v231
        %v277 = vunpack.c.l.b16 %v233
        %v278 = vunpack.c.l.b16 %v234
        %v279 = vunpack.c.l.b16 %v236
        %v280 = vunpack.c.l.b16 %v237
        %v281 = vunpack.c.l.b16 %v239
        %v282 = vunpack.c.l.b16 %v240
        %v283 = vunpack.c.l.b16 %v242
        %v284 = vunpack.c.l.b16 %v243
        %v285 = vunpack.c.l.b16 %v245
        %v286 = vunpack.c.l.b16 %v246
        %v287 = vunpack.c.l.b16 %v248
        %v288 = vunpack.c.l.b16 %v249
        %v289 = vpack.c.b16 %v274, %v273
        %v290 = vpack.c.b16 %v276, %v275
        %v291 = vpack.c.b16 %v278, %v277
        %v292 = vpack.c.b16 %v280, %v279
        %v293 = vpack.c.b16 %v282, %v281
        %v294 = vpack.c.b16 %v284, %v283
        %v295 = vpack.c.b16 %v286, %v285
        %v296 = vpack.c.b16 %v288, %v287
        %vm305 = vcmask 31744
        %306 = vst.msk [vmem:[#allocation2] sm:$0xff] %vm305, %v289
        %307 = vst.msk [vmem:[#allocation2 + $0x8] sm:$0xff] %vm305, %v290
        %308 = vst.msk [vmem:[#allocation2 + $0x10] sm:$0xff] %vm305, %v291
        %309 = vst.msk [vmem:[#allocation2 + $0x18] sm:$0xff] %vm305, %v292
        %310 = vst.msk [vmem:[#allocation2 + $0x20] sm:$0xff] %vm305, %v293
        %311 = vst.msk [vmem:[#allocation2 + $0x28] sm:$0xff] %vm305, %v294
        %312 = vst.msk [vmem:[#allocation2 + $0x30] sm:$0xff] %vm305, %v295
        %313 = vst.msk [vmem:[#allocation2 + $0x38] sm:$0xff] %vm305, %v296
        %vm314 = vsmask.f32 3328
        %vm315 = vsmask.f32 7440
        %vm316 = vmor %vm314, %vm315
        %v318 = vshrl.u32 %v227, 16
        %v320 = vrot.slane %v318, 4
        %v321 = vshll.u32 %v227, 16
        %v323 = vrot.slane %v321, 5
        %v324 = vor.u32 %v320, %v323
        %v325 = vrot.slane %v324, 4
        %v327 = vshll.u32 %v228, 16
        %v329 = vrot.slane %v327, 5
        %v330 = vsel %vm316, %v325, %v329
        %v331 = vshrl.u32 %v228, 16
        %v333 = vrot.slane %v331, 4
        %v334 = vor.u32 %v333, %v329
        %v335 = vrot.slane %v334, 4
        %v337 = vshll.u32 %v229, 16
        %v339 = vrot.slane %v337, 5
        %v340 = vsel %vm316, %v335, %v339
        %v342 = vshrl.u32 %v230, 16
        %v344 = vrot.slane %v342, 4
        %v345 = vshll.u32 %v230, 16
        %v347 = vrot.slane %v345, 5
        %v348 = vor.u32 %v344, %v347
        %v349 = vrot.slane %v348, 4
        %v351 = vshll.u32 %v231, 16
        %v353 = vrot.slane %v351, 5
        %v354 = vsel %vm316, %v349, %v353
        %v355 = vshrl.u32 %v231, 16
        %v357 = vrot.slane %v355, 4
        %v358 = vor.u32 %v357, %v353
        %v359 = vrot.slane %v358, 4
        %v361 = vshll.u32 %v232, 16
        %v363 = vrot.slane %v361, 5
        %v364 = vsel %vm316, %v359, %v363
        %v366 = vshrl.u32 %v233, 16
        %v368 = vrot.slane %v366, 4
        %v369 = vshll.u32 %v233, 16
        %v371 = vrot.slane %v369, 5
        %v372 = vor.u32 %v368, %v371
        %v373 = vrot.slane %v372, 4
        %v375 = vshll.u32 %v234, 16
        %v377 = vrot.slane %v375, 5
        %v378 = vsel %vm316, %v373, %v377
        %v379 = vshrl.u32 %v234, 16
        %v381 = vrot.slane %v379, 4
        %v382 = vor.u32 %v381, %v377
        %v383 = vrot.slane %v382, 4
        %v385 = vshll.u32 %v235, 16
        %v387 = vrot.slane %v385, 5
        %v388 = vsel %vm316, %v383, %v387
        %v390 = vshrl.u32 %v236, 16
        %v392 = vrot.slane %v390, 4
        %v393 = vshll.u32 %v236, 16
        %v395 = vrot.slane %v393, 5
        %v396 = vor.u32 %v392, %v395
        %v397 = vrot.slane %v396, 4
        %v399 = vshll.u32 %v237, 16
        %v401 = vrot.slane %v399, 5
        %v402 = vsel %vm316, %v397, %v401
        %v403 = vshrl.u32 %v237, 16
        %v405 = vrot.slane %v403, 4
        %v406 = vor.u32 %v405, %v401
        %v407 = vrot.slane %v406, 4
        %v409 = vshll.u32 %v238, 16
        %v411 = vrot.slane %v409, 5
        %v412 = vsel %vm316, %v407, %v411
        %v414 = vshrl.u32 %v239, 16
        %v416 = vrot.slane %v414, 4
        %v417 = vshll.u32 %v239, 16
        %v419 = vrot.slane %v417, 5
        %v420 = vor.u32 %v416, %v419
        %v421 = vrot.slane %v420, 4
        %v423 = vshll.u32 %v240, 16
        %v425 = vrot.slane %v423, 5
        %v426 = vsel %vm316, %v421, %v425
        %v427 = vshrl.u32 %v240, 16
        %v429 = vrot.slane %v427, 4
        %v430 = vor.u32 %v429, %v425
        %v431 = vrot.slane %v430, 4
        %v433 = vshll.u32 %v241, 16
        %v435 = vrot.slane %v433, 5
        %v436 = vsel %vm316, %v431, %v435
        %v438 = vshrl.u32 %v242, 16
        %v440 = vrot.slane %v438, 4
        %v441 = vshll.u32 %v242, 16
        %v443 = vrot.slane %v441, 5
        %v444 = vor.u32 %v440, %v443
        %v445 = vrot.slane %v444, 4
        %v447 = vshll.u32 %v243, 16
        %v449 = vrot.slane %v447, 5
        %v450 = vsel %vm316, %v445, %v449
        %v451 = vshrl.u32 %v243, 16
        %v453 = vrot.slane %v451, 4
        %v454 = vor.u32 %v453, %v449
        %v455 = vrot.slane %v454, 4
        %v457 = vshll.u32 %v244, 16
        %v459 = vrot.slane %v457, 5
        %v460 = vsel %vm316, %v455, %v459
        %v462 = vshrl.u32 %v245, 16
        %v464 = vrot.slane %v462, 4
        %v465 = vshll.u32 %v245, 16
        %v467 = vrot.slane %v465, 5
        %v468 = vor.u32 %v464, %v467
        %v469 = vrot.slane %v468, 4
        %v471 = vshll.u32 %v246, 16
        %v473 = vrot.slane %v471, 5
        %v474 = vsel %vm316, %v469, %v473
        %v475 = vshrl.u32 %v246, 16
        %v477 = vrot.slane %v475, 4
        %v478 = vor.u32 %v477, %v473
        %v479 = vrot.slane %v478, 4
        %v481 = vshll.u32 %v247, 16
        %v483 = vrot.slane %v481, 5
        %v484 = vsel %vm316, %v479, %v483
        %v486 = vshrl.u32 %v248, 16
        %v488 = vrot.slane %v486, 4
        %v489 = vshll.u32 %v248, 16
        %v491 = vrot.slane %v489, 5
        %v492 = vor.u32 %v488, %v491
        %v493 = vrot.slane %v492, 4
        %v495 = vshll.u32 %v249, 16
        %v497 = vrot.slane %v495, 5
        %v498 = vsel %vm316, %v493, %v497
        %v499 = vshrl.u32 %v249, 16
        %v501 = vrot.slane %v499, 4
        %v502 = vor.u32 %v501, %v497
        %v503 = vrot.slane %v502, 4
        %v505 = vshll.u32 %v250, 16
        %v507 = vrot.slane %v505, 5
        %v508 = vsel %vm316, %v503, %v507
        %v509 = vunpack.c.l.b16 %v330
        %v510 = vunpack.c.l.b16 %v340
        %v511 = vunpack.c.l.b16 %v354
        %v512 = vunpack.c.l.b16 %v364
        %v513 = vunpack.c.l.b16 %v378
        %v514 = vunpack.c.l.b16 %v388
        %v515 = vunpack.c.l.b16 %v402
        %v516 = vunpack.c.l.b16 %v412
        %v517 = vunpack.c.l.b16 %v426
        %v518 = vunpack.c.l.b16 %v436
        %v519 = vunpack.c.l.b16 %v450
        %v520 = vunpack.c.l.b16 %v460
        %v521 = vunpack.c.l.b16 %v474
        %v522 = vunpack.c.l.b16 %v484
        %v523 = vunpack.c.l.b16 %v498
        %v524 = vunpack.c.l.b16 %v508
        %v525 = vpack.c.b16 %v510, %v509
        %v526 = vpack.c.b16 %v512, %v511
        %v527 = vpack.c.b16 %v514, %v513
        %v528 = vpack.c.b16 %v516, %v515
        %v529 = vpack.c.b16 %v518, %v517
        %v530 = vpack.c.b16 %v520, %v519
        %v531 = vpack.c.b16 %v522, %v521
        %v532 = vpack.c.b16 %v524, %v523
        %533 = vrot.lane.b32.xlu0 %v525, 4
        %v534 = vpop.permute.xlu0 %533
        %535 = vrot.lane.b32.xlu0 %v526, 4
        %v536 = vpop.permute.xlu0 %535
        %537 = vrot.lane.b32.xlu0 %v527, 4
        %v538 = vpop.permute.xlu0 %537
        %539 = vrot.lane.b32.xlu0 %v528, 4
        %v540 = vpop.permute.xlu0 %539
        %541 = vrot.lane.b32.xlu0 %v529, 4
        %v542 = vpop.permute.xlu0 %541
        %543 = vrot.lane.b32.xlu0 %v530, 4
        %v544 = vpop.permute.xlu0 %543
        %545 = vrot.lane.b32.xlu0 %v531, 4
        %v546 = vpop.permute.xlu0 %545
        %547 = vrot.lane.b32.xlu0 %v532, 4
        %v548 = vpop.permute.xlu0 %547
        %vm557 = vcmask 64544
        %558 = vst.msk [vmem:[#allocation2] sm:$0xff] %vm557, %v534
        %559 = vst.msk [vmem:[#allocation2 + $0x8] sm:$0xff] %vm557, %v536
        %560 = vst.msk [vmem:[#allocation2 + $0x10] sm:$0xff] %vm557, %v538
        %561 = vst.msk [vmem:[#allocation2 + $0x18] sm:$0xff] %vm557, %v540
        %562 = vst.msk [vmem:[#allocation2 + $0x20] sm:$0xff] %vm557, %v542
        %563 = vst.msk [vmem:[#allocation2 + $0x28] sm:$0xff] %vm557, %v544
        %564 = vst.msk [vmem:[#allocation2 + $0x30] sm:$0xff] %vm557, %v546
        %565 = vst.msk [vmem:[#allocation2 + $0x38] sm:$0xff] %vm557, %v548
        %vm574 = vcmask 1042432
        %vm575 = vcmask 1046532
        %vm576 = vmor %vm574, %vm575
        %v577 = vrot.slane %v227, 5
        %v578 = vrot.slane %v577, 4
        %v579 = vrot.slane %v228, 5
        %v580 = vsel %vm576, %v578, %v579
        %v581 = vrot.slane %v579, 4
        %v582 = vrot.slane %v229, 5
        %v583 = vsel %vm576, %v581, %v582
        %v584 = vrot.slane %v230, 5
        %v585 = vrot.slane %v584, 4
        %v586 = vrot.slane %v231, 5
        %v587 = vsel %vm576, %v585, %v586
        %v588 = vrot.slane %v586, 4
        %v589 = vrot.slane %v232, 5
        %v590 = vsel %vm576, %v588, %v589
        %v591 = vrot.slane %v233, 5
        %v592 = vrot.slane %v591, 4
        %v593 = vrot.slane %v234, 5
        %v594 = vsel %vm576, %v592, %v593
        %v595 = vrot.slane %v593, 4
        %v596 = vrot.slane %v235, 5
        %v597 = vsel %vm576, %v595, %v596
        %v598 = vrot.slane %v236, 5
        %v599 = vrot.slane %v598, 4
        %v600 = vrot.slane %v237, 5
        %v601 = vsel %vm576, %v599, %v600
        %v602 = vrot.slane %v600, 4
        %v603 = vrot.slane %v238, 5
        %v604 = vsel %vm576, %v602, %v603
        %v605 = vrot.slane %v239, 5
        %v606 = vrot.slane %v605, 4
        %v607 = vrot.slane %v240, 5
        %v608 = vsel %vm576, %v606, %v607
        %v609 = vrot.slane %v607, 4
        %v610 = vrot.slane %v241, 5
        %v611 = vsel %vm576, %v609, %v610
        %v612 = vrot.slane %v242, 5
        %v613 = vrot.slane %v612, 4
        %v614 = vrot.slane %v243, 5
        %v615 = vsel %vm576, %v613, %v614
        %v616 = vrot.slane %v614, 4
        %v617 = vrot.slane %v244, 5
        %v618 = vsel %vm576, %v616, %v617
        %v619 = vrot.slane %v245, 5
        %v620 = vrot.slane %v619, 4
        %v621 = vrot.slane %v246, 5
        %v622 = vsel %vm576, %v620, %v621
        %v623 = vrot.slane %v621, 4
        %v624 = vrot.slane %v247, 5
        %v625 = vsel %vm576, %v623, %v624
        %v626 = vrot.slane %v248, 5
        %v627 = vrot.slane %v626, 4
        %v628 = vrot.slane %v249, 5
        %v629 = vsel %vm576, %v627, %v628
        %v630 = vrot.slane %v628, 4
        %v631 = vrot.slane %v250, 5
        %v632 = vsel %vm576, %v630, %v631
        %v633 = vunpack.c.l.b16 %v580
        %v634 = vunpack.c.l.b16 %v583
        %v635 = vunpack.c.l.b16 %v587
        %v636 = vunpack.c.l.b16 %v590
        %v637 = vunpack.c.l.b16 %v594
        %v638 = vunpack.c.l.b16 %v597
        %v639 = vunpack.c.l.b16 %v601
        %v640 = vunpack.c.l.b16 %v604
        %v641 = vunpack.c.l.b16 %v608
        %v642 = vunpack.c.l.b16 %v611
        %v643 = vunpack.c.l.b16 %v615
        %v644 = vunpack.c.l.b16 %v618
        %v645 = vunpack.c.l.b16 %v622
        %v646 = vunpack.c.l.b16 %v625
        %v647 = vunpack.c.l.b16 %v629
        %v648 = vunpack.c.l.b16 %v632
        %v649 = vpack.c.b16 %v634, %v633
        %v650 = vpack.c.b16 %v636, %v635
        %v651 = vpack.c.b16 %v638, %v637
        %v652 = vpack.c.b16 %v640, %v639
        %v653 = vpack.c.b16 %v642, %v641
        %v654 = vpack.c.b16 %v644, %v643
        %v655 = vpack.c.b16 %v646, %v645
        %v656 = vpack.c.b16 %v648, %v647
        %657 = vrot.lane.b32.xlu0 %v649, 8
        %v658 = vpop.permute.xlu0 %657
        %659 = vrot.lane.b32.xlu0 %v650, 8
        %v660 = vpop.permute.xlu0 %659
        %661 = vrot.lane.b32.xlu0 %v651, 8
        %v662 = vpop.permute.xlu0 %661
        %663 = vrot.lane.b32.xlu0 %v652, 8
        %v664 = vpop.permute.xlu0 %663
        %665 = vrot.lane.b32.xlu0 %v653, 8
        %v666 = vpop.permute.xlu0 %665
        %667 = vrot.lane.b32.xlu0 %v654, 8
        %v668 = vpop.permute.xlu0 %667
        %669 = vrot.lane.b32.xlu0 %v655, 8
        %v670 = vpop.permute.xlu0 %669
        %671 = vrot.lane.b32.xlu0 %v656, 8
        %v672 = vpop.permute.xlu0 %671
        %vm681 = vcmask 97344
        %682 = vst.msk [vmem:[#allocation2] sm:$0xff] %vm681, %v658
        %683 = vst.msk [vmem:[#allocation2 + $0x8] sm:$0xff] %vm681, %v660
        %684 = vst.msk [vmem:[#allocation2 + $0x10] sm:$0xff] %vm681, %v662
        %685 = vst.msk [vmem:[#allocation2 + $0x18] sm:$0xff] %vm681, %v664
        %686 = vst.msk [vmem:[#allocation2 + $0x20] sm:$0xff] %vm681, %v666
        %687 = vst.msk [vmem:[#allocation2 + $0x28] sm:$0xff] %vm681, %v668
        %688 = vst.msk [vmem:[#allocation2 + $0x30] sm:$0xff] %vm681, %v670
        %689 = vst.msk [vmem:[#allocation2 + $0x38] sm:$0xff] %vm681, %v672
        %v692 = vunpack.c.l.b16 %v251
        %v693 = vunpack.c.l.b16 %v252
        %v694 = vpack.c.b16 %v693, %v692
        %695 = vrot.lane.b32.xlu0 %v290, 12
        %v696 = vpop.permute.xlu0 %695
        %697 = vrot.lane.b32.xlu0 %v291, 12
        %v698 = vpop.permute.xlu0 %697
        %699 = vrot.lane.b32.xlu0 %v292, 12
        %v700 = vpop.permute.xlu0 %699
        %701 = vrot.lane.b32.xlu0 %v293, 12
        %v702 = vpop.permute.xlu0 %701
        %703 = vrot.lane.b32.xlu0 %v294, 12
        %v704 = vpop.permute.xlu0 %703
        %705 = vrot.lane.b32.xlu0 %v295, 12
        %v706 = vpop.permute.xlu0 %705
        %707 = vrot.lane.b32.xlu0 %v296, 12
        %v708 = vpop.permute.xlu0 %707
        %709 = vrot.lane.b32.xlu0 %v694, 12
        %v710 = vpop.permute.xlu0 %709
        %vm719 = vcmask 130144
        %720 = vst.msk [vmem:[#allocation2] sm:$0xff] %vm719, %v696
        %721 = vst.msk [vmem:[#allocation2 + $0x8] sm:$0xff] %vm719, %v698
        %722 = vst.msk [vmem:[#allocation2 + $0x10] sm:$0xff] %vm719, %v700
        %723 = vst.msk [vmem:[#allocation2 + $0x18] sm:$0xff] %vm719, %v702
        %724 = vst.msk [vmem:[#allocation2 + $0x20] sm:$0xff] %vm719, %v704
        %725 = vst.msk [vmem:[#allocation2 + $0x28] sm:$0xff] %vm719, %v706
        %726 = vst.msk [vmem:[#allocation2 + $0x30] sm:$0xff] %vm719, %v708
        %727 = vst.msk [vmem:[#allocation2 + $0x38] sm:$0xff] %vm719, %v710
        %v729 = vshrl.u32 %v251, 16
        %v731 = vrot.slane %v729, 4
        %v732 = vshll.u32 %v251, 16
        %v734 = vrot.slane %v732, 5
        %v735 = vor.u32 %v731, %v734
        %v736 = vrot.slane %v735, 4
        %v738 = vshll.u32 %v252, 16
        %v740 = vrot.slane %v738, 5
        %v741 = vsel %vm316, %v736, %v740
        %v742 = vshrl.u32 %v252, 16
        %v744 = vrot.slane %v742, 4
        %v745 = vor.u32 %v744, %v740
        %v746 = vrot.slane %v745, 4
        %v748 = vshll.u32 %v253, 16
        %v750 = vrot.slane %v748, 5
        %v751 = vsel %vm316, %v746, %v750
        %v752 = vunpack.c.l.b16 %v741
        %v753 = vunpack.c.l.b16 %v751
        %v754 = vpack.c.b16 %v753, %v752
        %755 = vrot.lane.b32.xlu0 %v526, 16
        %v756 = vpop.permute.xlu0 %755
        %757 = vrot.lane.b32.xlu0 %v527, 16
        %v758 = vpop.permute.xlu0 %757
        %759 = vrot.lane.b32.xlu0 %v528, 16
        %v760 = vpop.permute.xlu0 %759
        %761 = vrot.lane.b32.xlu0 %v529, 16
        %v762 = vpop.permute.xlu0 %761
        %763 = vrot.lane.b32.xlu0 %v530, 16
        %v764 = vpop.permute.xlu0 %763
        %765 = vrot.lane.b32.xlu0 %v531, 16
        %v766 = vpop.permute.xlu0 %765
        %767 = vrot.lane.b32.xlu0 %v532, 16
        %v768 = vpop.permute.xlu0 %767
        %769 = vrot.lane.b32.xlu0 %v754, 16
        %v770 = vpop.permute.xlu0 %769
        %vm779 = vcmask 162944
        %780 = vst.msk [vmem:[#allocation2] sm:$0xff] %vm779, %v756
        %781 = vst.msk [vmem:[#allocation2 + $0x8] sm:$0xff] %vm779, %v758
        %782 = vst.msk [vmem:[#allocation2 + $0x10] sm:$0xff] %vm779, %v760
        %783 = vst.msk [vmem:[#allocation2 + $0x18] sm:$0xff] %vm779, %v762
        %784 = vst.msk [vmem:[#allocation2 + $0x20] sm:$0xff] %vm779, %v764
        %785 = vst.msk [vmem:[#allocation2 + $0x28] sm:$0xff] %vm779, %v766
        %786 = vst.msk [vmem:[#allocation2 + $0x30] sm:$0xff] %vm779, %v768
        %787 = vst.msk [vmem:[#allocation2 + $0x38] sm:$0xff] %vm779, %v770
        %v789 = vrot.slane %v251, 5
        %v790 = vrot.slane %v789, 4
        %v791 = vrot.slane %v252, 5
        %v792 = vsel %vm576, %v790, %v791
        %v793 = vrot.slane %v791, 4
        %v794 = vrot.slane %v253, 5
        %v795 = vsel %vm576, %v793, %v794
        %v796 = vunpack.c.l.b16 %v792
        %v797 = vunpack.c.l.b16 %v795
        %v798 = vpack.c.b16 %v797, %v796
        %799 = vrot.lane.b32.xlu0 %v650, 20
        %v800 = vpop.permute.xlu0 %799
        %801 = vrot.lane.b32.xlu0 %v651, 20
        %v802 = vpop.permute.xlu0 %801
        %803 = vrot.lane.b32.xlu0 %v652, 20
        %v804 = vpop.permute.xlu0 %803
        %805 = vrot.lane.b32.xlu0 %v653, 20
        %v806 = vpop.permute.xlu0 %805
        %807 = vrot.lane.b32.xlu0 %v654, 20
        %v808 = vpop.permute.xlu0 %807
        %809 = vrot.lane.b32.xlu0 %v655, 20
        %v810 = vpop.permute.xlu0 %809
        %811 = vrot.lane.b32.xlu0 %v656, 20
        %v812 = vpop.permute.xlu0 %811
        %813 = vrot.lane.b32.xlu0 %v798, 20
        %v814 = vpop.permute.xlu0 %813
        %vm823 = vcmask 195744
        %824 = vst.msk [vmem:[#allocation2] sm:$0xff] %vm823, %v800
        %825 = vst.msk [vmem:[#allocation2 + $0x8] sm:$0xff] %vm823, %v802
        %826 = vst.msk [vmem:[#allocation2 + $0x10] sm:$0xff] %vm823, %v804
        %827 = vst.msk [vmem:[#allocation2 + $0x18] sm:$0xff] %vm823, %v806
        %828 = vst.msk [vmem:[#allocation2 + $0x20] sm:$0xff] %vm823, %v808
        %829 = vst.msk [vmem:[#allocation2 + $0x28] sm:$0xff] %vm823, %v810
        %830 = vst.msk [vmem:[#allocation2 + $0x30] sm:$0xff] %vm823, %v812
        %831 = vst.msk [vmem:[#allocation2 + $0x38] sm:$0xff] %vm823, %v814
        %v834 = vunpack.c.l.b16 %v254
        %v835 = vunpack.c.l.b16 %v255
        %v836 = vpack.c.b16 %v835, %v834
        %837 = vrot.lane.b32.xlu0 %v291, 24
        %v838 = vpop.permute.xlu0 %837
        %839 = vrot.lane.b32.xlu0 %v292, 24
        %v840 = vpop.permute.xlu0 %839
        %841 = vrot.lane.b32.xlu0 %v293, 24
        %v842 = vpop.permute.xlu0 %841
        %843 = vrot.lane.b32.xlu0 %v294, 24
        %v844 = vpop.permute.xlu0 %843
        %845 = vrot.lane.b32.xlu0 %v295, 24
        %v846 = vpop.permute.xlu0 %845
        %847 = vrot.lane.b32.xlu0 %v296, 24
        %v848 = vpop.permute.xlu0 %847
        %849 = vrot.lane.b32.xlu0 %v694, 24
        %v850 = vpop.permute.xlu0 %849
        %851 = vrot.lane.b32.xlu0 %v836, 24
        %v852 = vpop.permute.xlu0 %851
        %vm861 = vcmask 228544
        %862 = vst.msk [vmem:[#allocation2] sm:$0xff] %vm861, %v838
        %863 = vst.msk [vmem:[#allocation2 + $0x8] sm:$0xff] %vm861, %v840
        %864 = vst.msk [vmem:[#allocation2 + $0x10] sm:$0xff] %vm861, %v842
        %865 = vst.msk [vmem:[#allocation2 + $0x18] sm:$0xff] %vm861, %v844
        %866 = vst.msk [vmem:[#allocation2 + $0x20] sm:$0xff] %vm861, %v846
        %867 = vst.msk [vmem:[#allocation2 + $0x28] sm:$0xff] %vm861, %v848
        %868 = vst.msk [vmem:[#allocation2 + $0x30] sm:$0xff] %vm861, %v850
        %869 = vst.msk [vmem:[#allocation2 + $0x38] sm:$0xff] %vm861, %v852
        %v871 = vshrl.u32 %v254, 16
        %v873 = vrot.slane %v871, 4
        %v874 = vshll.u32 %v254, 16
        %v876 = vrot.slane %v874, 5
        %v877 = vor.u32 %v873, %v876
        %v878 = vrot.slane %v877, 4
        %v880 = vshll.u32 %v255, 16
        %v882 = vrot.slane %v880, 5
        %v883 = vsel %vm316, %v878, %v882
        %v884 = vshrl.u32 %v255, 16
        %v886 = vrot.slane %v884, 4
        %v887 = vor.u32 %v886, %v882
        %v888 = vrot.slane %v887, 4
        %v890 = vshll.u32 %v256, 16
        %v892 = vrot.slane %v890, 5
        %v893 = vsel %vm316, %v888, %v892
        %v894 = vunpack.c.l.b16 %v883
        %v895 = vunpack.c.l.b16 %v893
        %v896 = vpack.c.b16 %v895, %v894
        %897 = vrot.lane.b32.xlu0 %v527, 28
        %v898 = vpop.permute.xlu0 %897
        %899 = vrot.lane.b32.xlu0 %v528, 28
        %v900 = vpop.permute.xlu0 %899
        %901 = vrot.lane.b32.xlu0 %v529, 28
        %v902 = vpop.permute.xlu0 %901
        %903 = vrot.lane.b32.xlu0 %v530, 28
        %v904 = vpop.permute.xlu0 %903
        %905 = vrot.lane.b32.xlu0 %v531, 28
        %v906 = vpop.permute.xlu0 %905
        %907 = vrot.lane.b32.xlu0 %v532, 28
        %v908 = vpop.permute.xlu0 %907
        %909 = vrot.lane.b32.xlu0 %v754, 28
        %v910 = vpop.permute.xlu0 %909
        %911 = vrot.lane.b32.xlu0 %v896, 28
        %v912 = vpop.permute.xlu0 %911
        %vm921 = vcmask 261344
        %922 = vst.msk [vmem:[#allocation2] sm:$0xff] %vm921, %v898
        %923 = vst.msk [vmem:[#allocation2 + $0x8] sm:$0xff] %vm921, %v900
        %924 = vst.msk [vmem:[#allocation2 + $0x10] sm:$0xff] %vm921, %v902
        %925 = vst.msk [vmem:[#allocation2 + $0x18] sm:$0xff] %vm921, %v904
        %926 = vst.msk [vmem:[#allocation2 + $0x20] sm:$0xff] %vm921, %v906
        %927 = vst.msk [vmem:[#allocation2 + $0x28] sm:$0xff] %vm921, %v908
        %928 = vst.msk [vmem:[#allocation2 + $0x30] sm:$0xff] %vm921, %v910
        %929 = vst.msk [vmem:[#allocation2 + $0x38] sm:$0xff] %vm921, %v912
        %v931 = vrot.slane %v254, 5
        %v932 = vrot.slane %v931, 4
        %v933 = vrot.slane %v255, 5
        %v934 = vsel %vm576, %v932, %v933
        %v935 = vrot.slane %v933, 4
        %v936 = vrot.slane %v256, 5
        %v937 = vsel %vm576, %v935, %v936
        %v938 = vunpack.c.l.b16 %v934
        %v939 = vunpack.c.l.b16 %v937
        %v940 = vpack.c.b16 %v939, %v938
        %941 = vrot.lane.b32.xlu0 %v651, 32
        %v942 = vpop.permute.xlu0 %941
        %943 = vrot.lane.b32.xlu0 %v652, 32
        %v944 = vpop.permute.xlu0 %943
        %945 = vrot.lane.b32.xlu0 %v653, 32
        %v946 = vpop.permute.xlu0 %945
        %947 = vrot.lane.b32.xlu0 %v654, 32
        %v948 = vpop.permute.xlu0 %947
        %949 = vrot.lane.b32.xlu0 %v655, 32
        %v950 = vpop.permute.xlu0 %949
        %951 = vrot.lane.b32.xlu0 %v656, 32
        %v952 = vpop.permute.xlu0 %951
        %953 = vrot.lane.b32.xlu0 %v798, 32
        %v954 = vpop.permute.xlu0 %953
        %955 = vrot.lane.b32.xlu0 %v940, 32
        %v956 = vpop.permute.xlu0 %955
        %vm965 = vcmask 294144
        %966 = vst.msk [vmem:[#allocation2] sm:$0xff] %vm965, %v942
        %967 = vst.msk [vmem:[#allocation2 + $0x8] sm:$0xff] %vm965, %v944
        %968 = vst.msk [vmem:[#allocation2 + $0x10] sm:$0xff] %vm965, %v946
        %969 = vst.msk [vmem:[#allocation2 + $0x18] sm:$0xff] %vm965, %v948
        %970 = vst.msk [vmem:[#allocation2 + $0x20] sm:$0xff] %vm965, %v950
        %971 = vst.msk [vmem:[#allocation2 + $0x28] sm:$0xff] %vm965, %v952
        %972 = vst.msk [vmem:[#allocation2 + $0x30] sm:$0xff] %vm965, %v954
        %973 = vst.msk [vmem:[#allocation2 + $0x38] sm:$0xff] %vm965, %v956
        %v974 = vld [vmem:[#allocation2] sm:$0xff]
        %v975 = vld [vmem:[#allocation2 + $0x8] sm:$0xff]
        %v976 = vld [vmem:[#allocation2 + $0x10] sm:$0xff]
        %v977 = vld [vmem:[#allocation2 + $0x18] sm:$0xff]
        %v978 = vld [vmem:[#allocation2 + $0x20] sm:$0xff]
        %v979 = vld [vmem:[#allocation2 + $0x28] sm:$0xff]
        %v980 = vld [vmem:[#allocation2 + $0x30] sm:$0xff]
        %v981 = vld [vmem:[#allocation2 + $0x38] sm:$0xff]
        %v982 = vld [vmem:[%s1] sm:$0xf]
        %v983 = vld [vmem:[%s1 + $0x4] sm:$0xf]
        %v984 = vld [vmem:[%s1 + $0x8] sm:$0xf]
        %v985 = vld [vmem:[%s1 + $0xc] sm:$0xf]
        %v986 = vld [vmem:[%s1 + $0x10] sm:$0x3]
        %v992 = vunpack.c.l.b16 %v982
        %v993 = vunpack.c.l.b16 %v983
        %v994 = vunpack.c.l.b16 %v984
        %v995 = vunpack.c.l.b16 %v985
        %v996 = vunpack.c.l.b16 %v986
        %v997 = vpack.c.b16 %v993, %v992
        %v998 = vpack.c.b16 %v995, %v994
        %v999 = vpack.c.b16 %v996, %v996
        %vm1002 = vcmask 293888
        %v1004 = vsel %vm1002, %v974, 0
        %v1007 = vsel %vm1002, %v975, 0
        %v1010 = vsel %vm1002, %v976, 0
        %v1013 = vsel %vm1002, %v977, 0
        %v1016 = vsel %vm1002, %v978, 0
        %v1019 = vsel %vm1002, %v979, 0
        %v1022 = vsel %vm1002, %v980, 0
        %v1025 = vsel %vm1002, %v981, 0
        %vm1027 = vcmask 1041408
        %v1029 = vsel %vm1027, %v999, 0
        %1031 = vmatprep.subr.bf16.mxu0 0
        %1032 = vmatpush1.bf16.msra.mxu0 %v997
        %1033 = vmatprep.subr.bf16.mxu0 0
        %1034 = vmatpush1.bf16.msra.mxu0 %v998
        %1035 = vmatprep.subr.bf16.mxu0 0
        %1036 = vmatpush1.bf16.msra.mxu0 %v1029
        %1037 = vmatprep.subr.bf16.mxu0 0
        %1038 = vmatpush1.bf16.msra.mxu0 0
        %1039 = vmatprep.subr.bf16.mxu0 0
        %1040 = vmatpush1.bf16.msra.mxu0 0
        %1041 = vmatprep.subr.bf16.mxu0 0
        %1042 = vmatpush1.bf16.msra.mxu0 0
        %1043 = vmatprep.subr.bf16.mxu0 0
        %1044 = vmatpush1.bf16.msra.mxu0 0
        %1045 = vmatprep.subr.bf16.mxu0 0
        %1046 = vmatpush1.bf16.msra.mxu0 0
        %1047 = vmatprep.subr.bf16.mxu0 0
        %1048 = vmatpush1.bf16.msra.mxu0 0
        %1049 = vmatprep.subr.bf16.mxu0 0
        %1050 = vmatpush1.bf16.msra.mxu0 0
        %1051 = vmatprep.subr.bf16.mxu0 0
        %1052 = vmatpush1.bf16.msra.mxu0 0
        %1053 = vmatprep.subr.bf16.mxu0 0
        %1054 = vmatpush1.bf16.msra.mxu0 0
        %1055 = vmatprep.subr.bf16.mxu0 0
        %1056 = vmatpush1.bf16.msra.mxu0 0
        %1057 = vmatprep.subr.bf16.mxu0 0
        %1058 = vmatpush1.bf16.msra.mxu0 0
        %1059 = vmatprep.subr.bf16.mxu0 0
        %1060 = vmatpush1.bf16.msra.mxu0 0
        %1061 = vmatprep.subr.bf16.mxu0 0
        %1062 = vmatpush1.bf16.msra.mxu0 0
        %1063 = vmatprep.mubr.bf16.mxu0 0
        %1064 = vmatmul.mubr.bf16.gmra.mrb[0].mxu0 %v1004
        %v1065 = vpop.f32.mrb[0].mxu0
        %v1066 = vadd.f32 0.0, %v1065
        %v1067 = vpop.f32.mrb[0].mxu0
        %v1068 = vpop.f32.mrb[0].mxu0
        %v1069 = vadd.f32 0.0, %v1068
        %v1070 = vpop.f32.mrb[0].mxu0
        %1071 = vmatprep.mubr.bf16.mxu0 0
        %1072 = vmatmul.mubr.bf16.gmra.mrb[0].mxu0 %v1007
        %v1073 = vpop.f32.mrb[0].mxu0
        %v1074 = vadd.f32 0.0, %v1073
        %v1075 = vpop.f32.mrb[0].mxu0
        %v1076 = vpop.f32.mrb[0].mxu0
        %v1077 = vadd.f32 0.0, %v1076
        %v1078 = vpop.f32.mrb[0].mxu0
        %1079 = vmatprep.mubr.bf16.mxu0 0
        %1080 = vmatmul.mubr.bf16.gmra.mrb[0].mxu0 %v1010
        %v1081 = vpop.f32.mrb[0].mxu0
        %v1082 = vadd.f32 0.0, %v1081
        %v1083 = vpop.f32.mrb[0].mxu0
        %v1084 = vpop.f32.mrb[0].mxu0
        %v1085 = vadd.f32 0.0, %v1084
        %v1086 = vpop.f32.mrb[0].mxu0
        %1087 = vmatprep.mubr.bf16.mxu0 0
        %1088 = vmatmul.mubr.bf16.gmra.mrb[0].mxu0 %v1013
        %v1089 = vpop.f32.mrb[0].mxu0
        %v1090 = vadd.f32 0.0, %v1089
        %v1091 = vpop.f32.mrb[0].mxu0
        %v1092 = vpop.f32.mrb[0].mxu0
        %v1093 = vadd.f32 0.0, %v1092
        %v1094 = vpop.f32.mrb[0].mxu0
        %1095 = vmatprep.mubr.bf16.mxu0 0
        %1096 = vmatmul.mubr.bf16.gmra.mrb[0].mxu0 %v1016
        %v1097 = vpop.f32.mrb[0].mxu0
        %v1098 = vadd.f32 0.0, %v1097
        %v1099 = vpop.f32.mrb[0].mxu0
        %v1100 = vpop.f32.mrb[0].mxu0
        %v1101 = vadd.f32 0.0, %v1100
        %v1102 = vpop.f32.mrb[0].mxu0
        %1103 = vmatprep.mubr.bf16.mxu0 0
        %1104 = vmatmul.mubr.bf16.gmra.mrb[0].mxu0 %v1019
        %v1105 = vpop.f32.mrb[0].mxu0
        %v1106 = vadd.f32 0.0, %v1105
        %v1107 = vpop.f32.mrb[0].mxu0
        %v1108 = vpop.f32.mrb[0].mxu0
        %v1109 = vadd.f32 0.0, %v1108
        %v1110 = vpop.f32.mrb[0].mxu0
        %1111 = vmatprep.mubr.bf16.mxu0 0
        %1112 = vmatmul.mubr.bf16.gmra.mrb[0].mxu0 %v1022
        %v1113 = vpop.f32.mrb[0].mxu0
        %v1114 = vadd.f32 0.0, %v1113
        %v1115 = vpop.f32.mrb[0].mxu0
        %v1116 = vpop.f32.mrb[0].mxu0
        %v1117 = vadd.f32 0.0, %v1116
        %v1118 = vpop.f32.mrb[0].mxu0
        %1119 = vmatprep.mubr.bf16.mxu0 0
        %1120 = vmatmul.mubr.bf16.gmra.mrb[0].mxu0 %v1025
        %v1121 = vpop.f32.mrb[0].mxu0
        %v1122 = vadd.f32 0.0, %v1121
        %v1123 = vpop.f32.mrb[0].mxu0
        %v1124 = vpop.f32.mrb[0].mxu0
        %v1125 = vadd.f32 0.0, %v1124
        %v1126 = vpop.f32.mrb[0].mxu0
        %1127 = vdwg.mxu0
        %1128 = vst [vmem:[%s208] sm:$0xff] %v1066
        %1129 = vst [vmem:[%s208 + $0x8] sm:$0xff] %v1069
        %1130 = vst [vmem:[%s208 + $0x10] sm:$0xff] %v1074
        %1131 = vst [vmem:[%s208 + $0x18] sm:$0xff] %v1077
        %1132 = vst [vmem:[%s208 + $0x20] sm:$0xff] %v1082
        %1133 = vst [vmem:[%s208 + $0x28] sm:$0xff] %v1085
        %1134 = vst [vmem:[%s208 + $0x30] sm:$0xff] %v1090
        %1135 = vst [vmem:[%s208 + $0x38] sm:$0xff] %v1093
        %1136 = vst [vmem:[%s208 + $0x40] sm:$0xff] %v1098
        %1137 = vst [vmem:[%s208 + $0x48] sm:$0xff] %v1101
        %1138 = vst [vmem:[%s208 + $0x50] sm:$0xff] %v1106
        %1139 = vst [vmem:[%s208 + $0x58] sm:$0xff] %v1109
        %1140 = vst [vmem:[%s208 + $0x60] sm:$0xff] %v1114
        %1141 = vst [vmem:[%s208 + $0x68] sm:$0xff] %v1117
        %1142 = vst [vmem:[%s208 + $0x70] sm:$0xff] %v1122
        %1143 = vst [vmem:[%s208 + $0x78] sm:$0xff] %v1125
        %p1144 = scmp.eq.s32.totalorder %s27, 0
        // Predicated region
        $region33: #{tpu_custom_call.1} parent=31 // pred_check
          %p1145 = pneg %p1144
        $region34: #{tpu_custom_call.1} parent=31 // pred_check_branch
          %1147 = sbr.rel (%p1145) target = $region36
        $region35: #{tpu_custom_call.1} parent=31 // pred_region
          %1148 = vst [vmem:[%s215] sm:$0xff] 0.0
        $region36: #{tpu_custom_call.1} parent=31 // pred_fallthru
          _
        %v1149 = vadd.f32 %v1066, %v1069
        %v1150 = vadd.f32 %v1149, %v1074
        %v1151 = vadd.f32 %v1150, %v1077
        %v1152 = vadd.f32 %v1151, %v1082
        %v1153 = vadd.f32 %v1152, %v1085
        %v1154 = vadd.f32 %v1153, %v1090
        %v1155 = vadd.f32 %v1154, %v1093
        %v1156 = vadd.f32 %v1155, %v1098
        %v1157 = vadd.f32 %v1156, %v1101
        %v1158 = vadd.f32 %v1157, %v1106
        %v1159 = vadd.f32 %v1158, %v1109
        %v1160 = vadd.f32 %v1159, %v1114
        %v1161 = vadd.f32 %v1160, %v1117
        %v1162 = vadd.f32 %v1161, %v1122
        %v1163 = vadd.f32 %v1162, %v1125
        %v1164 = vrot.slane %v1163, 4
        %v1165 = vadd.f32 %v1163, %v1164
        %v1166 = vrot.slane %v1165, 2
        %v1167 = vadd.f32 %v1165, %v1166
        %v1168 = vrot.slane %v1167, 1
        %v1169 = vadd.f32 %v1167, %v1168
        %v1170 = vmul.f32 %v1066, %v1066
        %v1171 = vmul.f32 %v1069, %v1069
        %v1172 = vmul.f32 %v1074, %v1074
        %v1173 = vmul.f32 %v1077, %v1077
        %v1174 = vmul.f32 %v1082, %v1082
        %v1175 = vmul.f32 %v1085, %v1085
        %v1176 = vmul.f32 %v1090, %v1090
        %v1177 = vmul.f32 %v1093, %v1093
        %v1178 = vmul.f32 %v1098, %v1098
        %v1179 = vmul.f32 %v1101, %v1101
        %v1180 = vmul.f32 %v1106, %v1106
        %v1181 = vmul.f32 %v1109, %v1109
        %v1182 = vmul.f32 %v1114, %v1114
        %v1183 = vmul.f32 %v1117, %v1117
        %v1184 = vmul.f32 %v1122, %v1122
        %v1185 = vmul.f32 %v1125, %v1125
        %v1186 = vadd.f32 %v1170, %v1171
        %v1187 = vadd.f32 %v1186, %v1172
        %v1188 = vadd.f32 %v1187, %v1173
        %v1189 = vadd.f32 %v1188, %v1174
        %v1190 = vadd.f32 %v1189, %v1175
        %v1191 = vadd.f32 %v1190, %v1176
        %v1192 = vadd.f32 %v1191, %v1177
        %v1193 = vadd.f32 %v1192, %v1178
        %v1194 = vadd.f32 %v1193, %v1179
        %v1195 = vadd.f32 %v1194, %v1180
        %v1196 = vadd.f32 %v1195, %v1181
        %v1197 = vadd.f32 %v1196, %v1182
        %v1198 = vadd.f32 %v1197, %v1183
        %v1199 = vadd.f32 %v1198, %v1184
        %v1200 = vadd.f32 %v1199, %v1185
        %v1201 = vrot.slane %v1200, 4
        %v1202 = vadd.f32 %v1200, %v1201
        %v1203 = vrot.slane %v1202, 2
        %v1204 = vadd.f32 %v1202, %v1203
        %v1205 = vrot.slane %v1204, 1
        %v1206 = vadd.f32 %v1204, %v1205
        %vm1207 = vcmask 1040384
        %v1208 = vsel %vm1207, %v1169, %v1206
        %v1209 = vsel %vm1027, %v1208, 0.0
        %v1210 = vld [vmem:[%s215] sm:$0xff]
        %v1211 = vadd.f32 %v1210, %v1209
        %1212 = vst [vmem:[%s215] sm:$0xff] %v1211
        %s1213 = sand.u32 %s112, 1
        %s1214 = scalar_lea.sflag [#allocation4], %s1213
        %s1215 = sand.u32 %s112, 1
        %s1216 = smul.addr %s1215, 128
        %s1217 = scalar_lea.vmem [#allocation3], %s1216
        %s1218 = sand.u32 %s138, 1
        %s1219 = scalar_lea.sflag [#allocation6], %s1218
        %s1220 = sand.u32 %s138, 1
        %s1221 = smul.addr %s1220, 8
        %s1222 = scalar_lea.vmem [#allocation5], %s1221
        // Predicated region
        $region37: #{tpu_custom_call.1} parent=31 // pred_check
          %p1223 = pneg %p122
        $region38: #{tpu_custom_call.1} parent=31 // pred_check_branch
          %1225 = sbr.rel (%p1223) target = $region40
        $region39: #{tpu_custom_call.1} parent=31 // pred_region
          %s1226 = smul.u32 8, %s27
          %s1228 = ssub.s32 2048, 2048
          %1229 = vsyncadd %s1214, %s1228
          %s1230 = smul.addr %s1226, 2
          %s1231 = smul.addr %s26, 32
          %s1232 = sadd.s32 %s1230, %s1231
          %s1233 = smul.addr %s1232, 128
          %s1234 = scalar_lea.hbm %s3, %s1233
          %s1235 = sshll.u32 %s1217, 4
          %s1236 = int_to_ptr.vmem [resolvable:$true] %s1235
          %1241 = dma.vmem_to_hbm [thread:$0]  %s1236, 2048, %s1234, %s1214, 128, 128, 8
        $region40: #{tpu_custom_call.1} parent=31 // pred_fallthru
          _
        // Predicated region
        $region41: #{tpu_custom_call.1} parent=31 // pred_check
          %p1242 = pneg %p148
        $region42: #{tpu_custom_call.1} parent=31 // pred_check_branch
          %1244 = sbr.rel (%p1242) target = $region44
        $region43: #{tpu_custom_call.1} parent=31 // pred_region
          %s1246 = ssub.s32 128, 128
          %1247 = vsyncadd %s1219, %s1246
          %s1248 = smul.addr %s26, 128
          %s1249 = scalar_lea.hbm %s4, %s1248
          %s1251 = sshll.u32 %s1222, 4
          %s1252 = int_to_ptr.vmem [resolvable:$true] %s1251
          %1254 = dma.vmem_to_hbm [thread:$0]  %s1252, 128, %s1249, %s1219
        $region44: #{tpu_custom_call.1} parent=31 // pred_fallthru
          _
      $region32: #{tpu_custom_call.1} parent=5 // pred_fallthru
        _
      %p1255 = scmp.le.s32.totalorder 2, %s17
      // Predicated region
      $region45: #{tpu_custom_call.1} parent=5 // pred_check
        %p1256 = pneg %p1255
      $region46: #{tpu_custom_call.1} parent=5 // pred_check_branch
        %1258 = sbr.rel (%p1256) target = $region48
      $region47: #{tpu_custom_call.1} parent=5 // pred_region
        %s1259 = ssub.s32 %s17, 2
        // Predicated region
        $region49: #{tpu_custom_call.1} parent=47 // pred_check
          %p1260 = pneg %p128
        $region50: #{tpu_custom_call.1} parent=47 // pred_check_branch
          %1262 = sbr.rel (%p1260) target = $region52
        $region51: #{tpu_custom_call.1} parent=47 // pred_region
          %s1263 = sand.u32 %s113, 1
          %s1264 = scalar_lea.sflag [#allocation4], %s1263
          %s1265 = sand.u32 %s113, 1
          %s1266 = smul.addr %s1265, 128
          %s1267 = scalar_lea.vmem [#allocation3], %s1266
          %1268 = dma.done %s1264, 2048
        $region52: #{tpu_custom_call.1} parent=47 // pred_fallthru
          _
        // Predicated region
        $region53: #{tpu_custom_call.1} parent=47 // pred_check
          %p1269 = pneg %p154
        $region54: #{tpu_custom_call.1} parent=47 // pred_check_branch
          %1271 = sbr.rel (%p1269) target = $region56
        $region55: #{tpu_custom_call.1} parent=47 // pred_region
          %s1272 = sand.u32 %s139, 1
          %s1273 = scalar_lea.sflag [#allocation6], %s1272
          %s1274 = sand.u32 %s139, 1
          %s1275 = smul.addr %s1274, 8
          %s1276 = scalar_lea.vmem [#allocation5], %s1275
          %1277 = dma.done %s1273, 128
        $region56: #{tpu_custom_call.1} parent=47 // pred_fallthru
          _
      $region48: #{tpu_custom_call.1} parent=5 // pred_fallthru
        _
    $region6: #{tpu_custom_call.1} parent=1 // loop_footer
      %s21 = sadd.s32 1, %s17
    $region7: #{tpu_custom_call.1} parent=1 // loop_footer_branch
      %16 = sbr.rel target = $region3
    $region8: #{tpu_custom_call.1} parent=1 // loop_exit
      _
    %1278 = vsyncpa [#allocation4], 1
    %s1279 = scalar_lea.sflag [#allocation4], 1
    %1280 = vsyncpa %s1279, 1
    %1281 = vsyncpa [#allocation6], 1
    %s1282 = scalar_lea.sflag [#allocation6], 1
    %1283 = vsyncpa %s1282, 1

</llo_original>
